<compile_context>
chip_gen: v7x
topology: tpu7x:2x2x1
jax: 0.10.0
libtpu: 0.0.40
codegen_flags: <defaults>
</compile_context>

<pallas_src>
import functools

import jax
import jax.numpy as jnp
from jax.experimental import pallas as pl
from jax.experimental.pallas import tpu as pltpu


def _round_up(x: int, m: int) -> int:
    return ((x + m - 1) // m) * m


def mlp_softmax_kernel(x_ref, w1_ref, b1_ref, w2_ref, b2_ref, o_ref):
    # x: (TB, In) f32, w1: (In, H) f32, b1: (1, H) f32,
    # w2: (H, Out) f32, b2: (1, Out) f32, o: (TB, Out) f32
    h = jnp.dot(x_ref[...], w1_ref[...], preferred_element_type=jnp.float32)
    h = jnp.maximum(h + b1_ref[...], 0.0)
    logits = jnp.dot(h, w2_ref[...], preferred_element_type=jnp.float32)
    logits = logits + b2_ref[...]
    # Numerically stable softmax over the last axis, exact divide so rows sum
    # to 1 to f32 rounding (the approx reciprocal only gave ~1e-3).
    m = jnp.max(logits, axis=-1, keepdims=True)
    e = jnp.exp(logits - m)
    denom = jnp.sum(e, axis=-1, keepdims=True)
    o_ref[...] = (e / denom).astype(o_ref.dtype)
    # TODO(synk): with Out=4 the softmax/store vregs are only 4/128-lane
    # occupied (masked vst). If the deployment stacks many independent bandit
    # heads, pack them along the lane axis (block-diagonal weights, Out >= 128)
    # or emit the result transposed (Out, TB) so stores become lane-dense.


@functools.partial(jax.jit, static_argnames=("block_batch",))
def multi_bandit_forward(state, w1, b1, w2, b2, *, block_batch: int = 8192):
    """state: (B, input_size) f32. Returns softmax action probs (B, output_size) f32.

    Weights are stored pre-transposed as (in_features, out_features), i.e.
    PyTorch's `linear.weight.T`; biases are 1-D like nn.Linear.
    """
    batch, in_size = state.shape
    hidden = w1.shape[1]
    out_size = w2.shape[1]

    # Pad the batch only up to the next multiple of 8 (sublane constraint);
    # never to a multiple of the tile -- the last tile may be ragged.
    rb = _round_up(batch, 8)
    x = state if rb == batch else jnp.pad(state, ((0, rb - batch), (0, 0)))

    # Batch tile: as large as block_batch (amortizes the per-grid-step
    # overhead), but aim for >= 2 grid steps so v7x's two TensorCores both get
    # work on mid-size batches.  Always a multiple of 8 and <= rb.
    tb = min(block_batch, max(8, _round_up(pl.cdiv(rb, 2), 8)))
    grid = (pl.cdiv(rb, tb),)

    w1f = w1.astype(jnp.float32)
    w2f = w2.astype(jnp.float32)
    b1f = b1.reshape(1, hidden).astype(jnp.float32)
    b2f = b2.reshape(1, out_size).astype(jnp.float32)

    out = pl.pallas_call(
        mlp_softmax_kernel,
        out_shape=jax.ShapeDtypeStruct((rb, out_size), jnp.float32),
        grid_spec=pltpu.PrefetchScalarGridSpec(
            num_scalar_prefetch=0,
            grid=grid,
            in_specs=[
                # Activations: stream one batch tile per grid step (ragged
                # last tile handled by Pallas; OOB rows are dropped on store).
                pl.BlockSpec((tb, in_size), lambda i: (i, 0)),
                # Weights / biases: constant index maps -> DMA'd once,
                # VMEM-resident for the whole grid.
                pl.BlockSpec((in_size, hidden), lambda i: (0, 0)),
                pl.BlockSpec((1, hidden), lambda i: (0, 0)),
                pl.BlockSpec((hidden, out_size), lambda i: (0, 0)),
                pl.BlockSpec((1, out_size), lambda i: (0, 0)),
            ],
            out_specs=pl.BlockSpec((tb, out_size), lambda i: (i, 0)),
        ),
        compiler_params=pltpu.CompilerParams(
            # Independent batch tiles: let v7x's two TensorCores split them.
            dimension_semantics=("parallel",),
        ),
    )(x, w1f, b1f, w2f, b2f)
    return out[:batch]


def init_params(key, input_size, hidden_size, output_size):
    """Deterministic init mimicking nn.Linear's uniform(-1/sqrt(fan_in), 1/sqrt(fan_in))."""
    k1, k2, k3, k4 = jax.random.split(key, 4)
    lim1 = 1.0 / jnp.sqrt(jnp.float32(input_size))
    lim2 = 1.0 / jnp.sqrt(jnp.float32(hidden_size))
    # stored as (in, out) == PyTorch weight.T; biases 1-D like nn.Linear.
    w1 = jax.random.uniform(k1, (input_size, hidden_size), jnp.float32, -lim1, lim1)
    b1 = jax.random.uniform(k2, (hidden_size,), jnp.float32, -lim1, lim1)
    w2 = jax.random.uniform(k3, (hidden_size, output_size), jnp.float32, -lim2, lim2)
    b2 = jax.random.uniform(k4, (output_size,), jnp.float32, -lim2, lim2)
    return w1, b1, w2, b2


def _reference(state, w1, b1, w2, b2):
    # True fp32 reference matching the PyTorch module.
    h = jnp.maximum(state @ w1 + b1.reshape(1, -1), 0.0)
    return jax.nn.softmax(h @ w2 + b2.reshape(1, -1), axis=-1)


if __name__ == "__main__":
    # Shapes implied by the module: Box observation space with 16 dims,
    # Discrete action space with 4 actions, hidden_size=32.
    input_size, hidden_size, output_size = 16, 32, 4

    key = jax.random.PRNGKey(0)
    k_params, k_small, k_big = jax.random.split(key, 3)
    w1, b1, w2, b2 = init_params(k_params, input_size, hidden_size, output_size)

    # --- Small aligned batch: single grid step. ---
    state = jax.random.normal(k_small, (8, input_size), jnp.float32)
    probs = jax.block_until_ready(multi_bandit_forward(state, w1, b1, w2, b2))
    ref = _reference(state, w1, b1, w2, b2)
    assert probs.shape == (8, output_size)
    assert jnp.allclose(probs, ref, atol=5e-3), "mismatch vs fp32 reference (small batch)"
    assert jnp.allclose(jnp.sum(probs, axis=-1), 1.0, atol=1e-5)

    # --- Larger, non-tile-aligned batch: 2 grid steps, ragged last tile. ---
    big_batch = 1000  # tile 504 -> grid (2,), second tile ragged
    big_state = jax.random.normal(k_big, (big_batch, input_size), jnp.float32)
    big_probs = jax.block_until_ready(multi_bandit_forward(big_state, w1, b1, w2, b2))
    big_ref = _reference(big_state, w1, b1, w2, b2)
    assert big_probs.shape == (big_batch, output_size)
    assert jnp.allclose(big_probs, big_ref, atol=5e-3), "mismatch vs fp32 reference (big batch)"
    assert jnp.allclose(jnp.sum(big_probs, axis=-1), 1.0, atol=1e-5)

    # --- Tiny, non-multiple-of-8 batch: exercises the <=7-row sublane pad. ---
    tiny_state = jax.random.normal(k_small, (3, input_size), jnp.float32)
    tiny_probs = jax.block_until_ready(multi_bandit_forward(tiny_state, w1, b1, w2, b2))
    tiny_ref = _reference(tiny_state, w1, b1, w2, b2)
    assert tiny_probs.shape == (3, output_size)
    assert jnp.allclose(tiny_probs, tiny_ref, atol=5e-3), "mismatch vs fp32 reference (tiny batch)"
    assert jnp.allclose(jnp.sum(tiny_probs, axis=-1), 1.0, atol=1e-5)

    print("KERNEL_OK")
</pallas_src>

<mosaic_0001>
module attributes {stable_mosaic.version = 11 : i64} {
  func.func @mlp_softmax_kernel(%arg0: i32, %arg1: memref<8x16xf32, #tpu.memory_space<vmem>>, %arg2: memref<16x32xf32, #tpu.memory_space<vmem>>, %arg3: memref<1x32xf32, #tpu.memory_space<vmem>>, %arg4: memref<32x4xf32, #tpu.memory_space<vmem>>, %arg5: memref<1x4xf32, #tpu.memory_space<vmem>>, %arg6: memref<8x4xf32, #tpu.memory_space<vmem>>) attributes {dimension_semantics = [#tpu.dimension_semantics<parallel>], iteration_bounds = array<i64: 1>, scalar_prefetch = 0 : i64, scratch_operands = 0 : i64, tpu.core_type = #tpu.core_type<tc>, window_params = [{transform_indices = @transform_0, window_bounds = array<i64: 8, 16>}, {pipeline_mode = #tpu.pipeline_mode<synchronous>, transform_indices = @transform_1, window_bounds = array<i64: 16, 32>}, {pipeline_mode = #tpu.pipeline_mode<synchronous>, transform_indices = @transform_2, window_bounds = array<i64: 1, 32>}, {pipeline_mode = #tpu.pipeline_mode<synchronous>, transform_indices = @transform_3, window_bounds = array<i64: 32, 4>}, {pipeline_mode = #tpu.pipeline_mode<synchronous>, transform_indices = @transform_4, window_bounds = array<i64: 1, 4>}, {transform_indices = @transform_5, window_bounds = array<i64: 8, 4>}]} {
    %c0 = arith.constant 0 : index
    %c0_0 = arith.constant 0 : index
    %0 = vector.load %arg1[%c0, %c0_0] : memref<8x16xf32, #tpu.memory_space<vmem>>, vector<8x16xf32>
    %c0_1 = arith.constant 0 : index
    %c0_2 = arith.constant 0 : index
    %1 = vector.load %arg2[%c0_1, %c0_2] : memref<16x32xf32, #tpu.memory_space<vmem>>, vector<16x32xf32>
    %cst = arith.constant dense<0.000000e+00> : vector<8x32xf32>
    %2 = tpu.matmul %0, %1, %cst {dimension_numbers = #tpu.dot_dimension_numbers<[1], [0], [0], [1], [0, 0, 1, 1], [], []>} : vector<8x16xf32>, vector<16x32xf32>, vector<8x32xf32> -> vector<8x32xf32>
    %c0_3 = arith.constant 0 : index
    %c0_4 = arith.constant 0 : index
    %3 = vector.load %arg3[%c0_3, %c0_4] : memref<1x32xf32, #tpu.memory_space<vmem>>, vector<1x32xf32>
    %4 = vector.broadcast %3 : vector<1x32xf32> to vector<8x32xf32>
    %5 = arith.addf %2, %4 : vector<8x32xf32>
    %cst_5 = arith.constant 0.000000e+00 : f32
    %6 = vector.broadcast %cst_5 : f32 to vector<8x32xf32>
    %7 = arith.maximumf %5, %6 : vector<8x32xf32>
    %c0_6 = arith.constant 0 : index
    %c0_7 = arith.constant 0 : index
    %8 = vector.load %arg4[%c0_6, %c0_7] : memref<32x4xf32, #tpu.memory_space<vmem>>, vector<32x4xf32>
    %cst_8 = arith.constant dense<0.000000e+00> : vector<8x4xf32>
    %9 = tpu.matmul %7, %8, %cst_8 {dimension_numbers = #tpu.dot_dimension_numbers<[1], [0], [0], [1], [0, 0, 1, 1], [], []>} : vector<8x32xf32>, vector<32x4xf32>, vector<8x4xf32> -> vector<8x4xf32>
    %c0_9 = arith.constant 0 : index
    %c0_10 = arith.constant 0 : index
    %10 = vector.load %arg5[%c0_9, %c0_10] : memref<1x4xf32, #tpu.memory_space<vmem>>, vector<1x4xf32>
    %11 = vector.broadcast %10 : vector<1x4xf32> to vector<8x4xf32>
    %12 = arith.addf %9, %11 : vector<8x4xf32>
    %cst_11 = arith.constant dense<0xFF800000> : vector<8xf32>
    %13 = vector.multi_reduction <maximumf>, %12, %cst_11 [1] : vector<8x4xf32> to vector<8xf32>
    %14 = vector.shape_cast %13 : vector<8xf32> to vector<8x1xf32>
    %15 = vector.broadcast %14 : vector<8x1xf32> to vector<8x4xf32>
    %16 = arith.subf %12, %15 : vector<8x4xf32>
    %17 = math.exp %16 : vector<8x4xf32>
    %cst_12 = arith.constant dense<0.000000e+00> : vector<8xf32>
    %18 = vector.multi_reduction <add>, %17, %cst_12 [1] : vector<8x4xf32> to vector<8xf32>
    %19 = vector.shape_cast %18 : vector<8xf32> to vector<8x1xf32>
    %20 = vector.broadcast %19 : vector<8x1xf32> to vector<8x4xf32>
    %21 = arith.divf %17, %20 : vector<8x4xf32>
    %c0_13 = arith.constant 0 : index
    %c0_14 = arith.constant 0 : index
    %22 = vector.load %arg6[%c0_13, %c0_14] : memref<8x4xf32, #tpu.memory_space<vmem>>, vector<8x4xf32>
    tpu.vector_store %arg6[%c0_13, %c0_14], %21 {strides = array<i32>} : memref<8x4xf32, #tpu.memory_space<vmem>>, vector<8x4xf32>,
    return
  }
  func.func @transform_0(%arg0: i32) -> (i32, i32) {
    %c0_i32 = arith.constant 0 : i32
    %c0_i32_0 = arith.constant 0 : i32
    return %arg0, %c0_i32 : i32, i32
  }
  func.func @transform_1(%arg0: i32) -> (i32, i32) {
    %c0_i32 = arith.constant 0 : i32
    %c0_i32_0 = arith.constant 0 : i32
    %c0_i32_1 = arith.constant 0 : i32
    return %c0_i32, %c0_i32_0 : i32, i32
  }
  func.func @transform_2(%arg0: i32) -> (i32, i32) {
    %c0_i32 = arith.constant 0 : i32
    %c0_i32_0 = arith.constant 0 : i32
    %c0_i32_1 = arith.constant 0 : i32
    return %c0_i32, %c0_i32_0 : i32, i32
  }
  func.func @transform_3(%arg0: i32) -> (i32, i32) {
    %c0_i32 = arith.constant 0 : i32
    %c0_i32_0 = arith.constant 0 : i32
    %c0_i32_1 = arith.constant 0 : i32
    return %c0_i32, %c0_i32_0 : i32, i32
  }
  func.func @transform_4(%arg0: i32) -> (i32, i32) {
    %c0_i32 = arith.constant 0 : i32
    %c0_i32_0 = arith.constant 0 : i32
    %c0_i32_1 = arith.constant 0 : i32
    return %c0_i32, %c0_i32_0 : i32, i32
  }
  func.func @transform_5(%arg0: i32) -> (i32, i32) {
    %c0_i32 = arith.constant 0 : i32
    %c0_i32_0 = arith.constant 0 : i32
    return %arg0, %c0_i32 : i32, i32
  }
}

</mosaic_0001>

<llo_original>
// kernel: multi_bandit_forward.1
$region0: #{multi_bandit_forward.1}
  #allocation0 [shape = 'u32[]', space=smem, size = 0x4, offset = 0x4, fixed_abs, tag = 'smem constant byte address 0x4 - core index']
  #allocation1 [shape = 'u32[144,128]{1,0:T(1,128)}', space=vmem, size = 0x12000, scoped, tag = 'internal scratch']
  %s0 = inlined_call_operand.vmem [shape: f32[8,16], index: 0, kind: input, shape index: {}]
  %s1 = inlined_call_operand.vmem [shape: f32[16,32], index: 1, kind: input, shape index: {}]
  %s2 = inlined_call_operand.vmem [shape: f32[1,32], index: 2, kind: input, shape index: {}]
  %s3 = inlined_call_operand.vmem [shape: f32[32,4], index: 3, kind: input, shape index: {}]
  %s4 = inlined_call_operand.vmem [shape: f32[1,4], index: 4, kind: input, shape index: {}]
  %s5 = inlined_call_operand.vmem [shape: f32[8,4], index: 5, kind: output, shape index: {}]
  %s6 = sld [smem:[#allocation0]]
  $region30: #{multi_bandit_forward.1} parent=0
    _
  %s8 = ssub.s32 1, %s6
  %s9 = scalar_select 0, %s8, %s6
  // Predicated region
  $region2: #{multi_bandit_forward.1} parent=0 // pred_check
    _
  $region3: #{multi_bandit_forward.1} parent=0 // pred_check_branch
    %11 = sbr.rel (0) target = $region5
  $region4: #{multi_bandit_forward.1} parent=0 // pred_region
    _
  $region5: #{multi_bandit_forward.1} parent=0 // pred_fallthru
    _
  // Predicated region
  $region6: #{multi_bandit_forward.1} parent=0 // pred_check
    _
  $region7: #{multi_bandit_forward.1} parent=0 // pred_check_branch
    %13 = sbr.rel (0) target = $region9
  $region8: #{multi_bandit_forward.1} parent=0 // pred_region
    _
  $region9: #{multi_bandit_forward.1} parent=0 // pred_fallthru
    _
  // Predicated region
  $region10: #{multi_bandit_forward.1} parent=0 // pred_check
    _
  $region11: #{multi_bandit_forward.1} parent=0 // pred_check_branch
    %15 = sbr.rel (0) target = $region13
  $region12: #{multi_bandit_forward.1} parent=0 // pred_region
    _
  $region13: #{multi_bandit_forward.1} parent=0 // pred_fallthru
    _
  // Predicated region
  $region14: #{multi_bandit_forward.1} parent=0 // pred_check
    _
  $region15: #{multi_bandit_forward.1} parent=0 // pred_check_branch
    %17 = sbr.rel (0) target = $region17
  $region16: #{multi_bandit_forward.1} parent=0 // pred_region
    _
  $region17: #{multi_bandit_forward.1} parent=0 // pred_fallthru
    _
  // Predicated region
  $region18: #{multi_bandit_forward.1} parent=0 // pred_check
    _
  $region19: #{multi_bandit_forward.1} parent=0 // pred_check_branch
    %19 = sbr.rel (0) target = $region21
  $region20: #{multi_bandit_forward.1} parent=0 // pred_region
    _
  $region21: #{multi_bandit_forward.1} parent=0 // pred_fallthru
    _
  %v20 = vld [vmem:[%s0] sm:$0xff]
  %v21 = vld [vmem:[%s1] sm:$0xff]
  %v22 = vld [vmem:[%s1 + $0x8] sm:$0xff]
  %v23 = vld [vmem:[%s2] sm:$0x1]
  %v25 = vlaneseq
  %v26 = vshrl.u32 %v25, 7
  %v27 = vsub.s32 0, %v26
  %v28 = vrot.slane %v23, %v27
  %vm30 = vcmask 130048
  %v32 = vsel %vm30, %v20, 0
  %34 = vmatprep.subr.mxu0 0.0
  %35 = vmatpush1.msra.mxu0 %v21
  %36 = vmatprep.subr.mxu0 0.0
  %37 = vmatpush1.msra.mxu0 %v22
  %38 = vmatprep.subr.mxu0 0.0
  %39 = vmatpush1.msra.mxu0 0.0
  %40 = vmatprep.subr.mxu0 0.0
  %41 = vmatpush1.msra.mxu0 0.0
  %42 = vmatprep.subr.mxu0 0.0
  %43 = vmatpush1.msra.mxu0 0.0
  %44 = vmatprep.subr.mxu0 0.0
  %45 = vmatpush1.msra.mxu0 0.0
  %46 = vmatprep.subr.mxu0 0.0
  %47 = vmatpush1.msra.mxu0 0.0
  %48 = vmatprep.subr.mxu0 0.0
  %49 = vmatpush1.msra.mxu0 0.0
  %50 = vmatprep.subr.mxu0 0.0
  %51 = vmatpush1.msra.mxu0 0.0
  %52 = vmatprep.subr.mxu0 0.0
  %53 = vmatpush1.msra.mxu0 0.0
  %54 = vmatprep.subr.mxu0 0.0
  %55 = vmatpush1.msra.mxu0 0.0
  %56 = vmatprep.subr.mxu0 0.0
  %57 = vmatpush1.msra.mxu0 0.0
  %58 = vmatprep.subr.mxu0 0.0
  %59 = vmatpush1.msra.mxu0 0.0
  %60 = vmatprep.subr.mxu0 0.0
  %61 = vmatpush1.msra.mxu0 0.0
  %62 = vmatprep.subr.mxu0 0.0
  %63 = vmatpush1.msra.mxu0 0.0
  %64 = vmatprep.subr.mxu0 0.0
  %65 = vmatpush1.msra.mxu0 0.0
  %66 = vmatprep.subr.mxu0 0.0
  %67 = vmatpush1.msra.mxu0 0.0
  %68 = vmatprep.subr.mxu0 0.0
  %69 = vmatpush1.msra.mxu0 0.0
  %70 = vmatprep.subr.mxu0 0.0
  %71 = vmatpush1.msra.mxu0 0.0
  %72 = vmatprep.subr.mxu0 0.0
  %73 = vmatpush1.msra.mxu0 0.0
  %74 = vmatprep.subr.mxu0 0.0
  %75 = vmatpush1.msra.mxu0 0.0
  %76 = vmatprep.subr.mxu0 0.0
  %77 = vmatpush1.msra.mxu0 0.0
  %78 = vmatprep.subr.mxu0 0.0
  %79 = vmatpush1.msra.mxu0 0.0
  %80 = vmatprep.subr.mxu0 0.0
  %81 = vmatpush1.msra.mxu0 0.0
  %82 = vmatprep.subr.mxu0 0.0
  %83 = vmatpush1.msra.mxu0 0.0
  %84 = vmatprep.subr.mxu0 0.0
  %85 = vmatpush1.msra.mxu0 0.0
  %86 = vmatprep.subr.mxu0 0.0
  %87 = vmatpush1.msra.mxu0 0.0
  %88 = vmatprep.subr.mxu0 0.0
  %89 = vmatpush1.msra.mxu0 0.0
  %90 = vmatprep.subr.mxu0 0.0
  %91 = vmatpush1.msra.mxu0 0.0
  %92 = vmatprep.subr.mxu0 0.0
  %93 = vmatpush1.msra.mxu0 0.0
  %94 = vmatprep.subr.mxu0 0.0
  %95 = vmatpush1.msra.mxu0 0.0
  %96 = vmatprep.subr.mxu0 0.0
  %97 = vmatpush1.msra.mxu0 0.0
  %98 = vmatprep.mubr.f32.mxu0 0.0
  %99 = vmatmul.mubr.f32.gmra.mrb[0].mxu0 %v32
  %v100 = vpop.f32.mrb[0].mxu0
  %v101 = vadd.f32 %v28, %v100
  %v102 = vpop.f32.mrb[0].mxu0
  %103 = vdwg.mxu0
  %v104 = vmax.f32 %v101, 0.0
  %v105 = vld [vmem:[%s3] sm:$0xff]
  %v106 = vld [vmem:[%s3 + $0x8] sm:$0xff]
  %v107 = vld [vmem:[%s3 + $0x10] sm:$0xff]
  %v108 = vld [vmem:[%s3 + $0x18] sm:$0xff]
  %v109 = vld [vmem:[%s4] sm:$0x1]
  %v111 = vlaneseq
  %v112 = vshrl.u32 %v111, 7
  %v113 = vsub.s32 0, %v112
  %v114 = vrot.slane %v109, %v113
  %vm116 = vcmask 261120
  %v118 = vsel %vm116, %v104, 0
  %120 = vmatprep.subr.mxu0 0.0
  %121 = vmatpush1.msra.mxu0 %v105
  %122 = vmatprep.subr.mxu0 0.0
  %123 = vmatpush1.msra.mxu0 %v106
  %124 = vmatprep.subr.mxu0 0.0
  %125 = vmatpush1.msra.mxu0 %v107
  %126 = vmatprep.subr.mxu0 0.0
  %127 = vmatpush1.msra.mxu0 %v108
  %128 = vmatprep.subr.mxu0 0.0
  %129 = vmatpush1.msra.mxu0 0.0
  %130 = vmatprep.subr.mxu0 0.0
  %131 = vmatpush1.msra.mxu0 0.0
  %132 = vmatprep.subr.mxu0 0.0
  %133 = vmatpush1.msra.mxu0 0.0
  %134 = vmatprep.subr.mxu0 0.0
  %135 = vmatpush1.msra.mxu0 0.0
  %136 = vmatprep.subr.mxu0 0.0
  %137 = vmatpush1.msra.mxu0 0.0
  %138 = vmatprep.subr.mxu0 0.0
  %139 = vmatpush1.msra.mxu0 0.0
  %140 = vmatprep.subr.mxu0 0.0
  %141 = vmatpush1.msra.mxu0 0.0
  %142 = vmatprep.subr.mxu0 0.0
  %143 = vmatpush1.msra.mxu0 0.0
  %144 = vmatprep.subr.mxu0 0.0
  %145 = vmatpush1.msra.mxu0 0.0
  %146 = vmatprep.subr.mxu0 0.0
  %147 = vmatpush1.msra.mxu0 0.0
  %148 = vmatprep.subr.mxu0 0.0
  %149 = vmatpush1.msra.mxu0 0.0
  %150 = vmatprep.subr.mxu0 0.0
  %151 = vmatpush1.msra.mxu0 0.0
  %152 = vmatprep.subr.mxu0 0.0
  %153 = vmatpush1.msra.mxu0 0.0
  %154 = vmatprep.subr.mxu0 0.0
  %155 = vmatpush1.msra.mxu0 0.0
  %156 = vmatprep.subr.mxu0 0.0
  %157 = vmatpush1.msra.mxu0 0.0
  %158 = vmatprep.subr.mxu0 0.0
  %159 = vmatpush1.msra.mxu0 0.0
  %160 = vmatprep.subr.mxu0 0.0
  %161 = vmatpush1.msra.mxu0 0.0
  %162 = vmatprep.subr.mxu0 0.0
  %163 = vmatpush1.msra.mxu0 0.0
  %164 = vmatprep.subr.mxu0 0.0
  %165 = vmatpush1.msra.mxu0 0.0
  %166 = vmatprep.subr.mxu0 0.0
  %167 = vmatpush1.msra.mxu0 0.0
  %168 = vmatprep.subr.mxu0 0.0
  %169 = vmatpush1.msra.mxu0 0.0
  %170 = vmatprep.subr.mxu0 0.0
  %171 = vmatpush1.msra.mxu0 0.0
  %172 = vmatprep.subr.mxu0 0.0
  %173 = vmatpush1.msra.mxu0 0.0
  %174 = vmatprep.subr.mxu0 0.0
  %175 = vmatpush1.msra.mxu0 0.0
  %176 = vmatprep.subr.mxu0 0.0
  %177 = vmatpush1.msra.mxu0 0.0
  %178 = vmatprep.subr.mxu0 0.0
  %179 = vmatpush1.msra.mxu0 0.0
  %180 = vmatprep.subr.mxu0 0.0
  %181 = vmatpush1.msra.mxu0 0.0
  %182 = vmatprep.subr.mxu0 0.0
  %183 = vmatpush1.msra.mxu0 0.0
  %184 = vmatprep.mubr.f32.mxu0 0.0
  %185 = vmatmul.mubr.f32.gmra.mrb[0].mxu0 %v118
  %v186 = vpop.f32.mrb[0].mxu0
  %v187 = vadd.f32 %v114, %v186
  %v188 = vpop.f32.mrb[0].mxu0
  %189 = vdwg.mxu0
  %vm190 = vcmask 31744
  %v191 = vsel %vm190, %v187, -inf
  %192 = vmax.xlane.f32.xlu0 %v191
  %v193 = vpop.xlane.xlu0 %192
  %v194 = vsub.f32 %v187, %v193
  %v195 = vmul.f32 %v194, 1.442695
  %v196 = vpow.pop %v195
  %v197 = vsel %vm190, %v196, 0.0
  %198 = vadd.xlane.f32.xlu0 %v197
  %v199 = vpop.xlane.xlu0 %198
  %v200 = vrcp.pop %v199
  %v201 = vmul.f32 %v196, %v200
  %202 = vst.msk [vmem:[%s5] sm:$0xff] %vm190, %v201
  // Predicated region
  $region22: #{multi_bandit_forward.1} parent=0 // pred_check
    _
  $region23: #{multi_bandit_forward.1} parent=0 // pred_check_branch
    %204 = sbr.rel (0) target = $region25
  $region24: #{multi_bandit_forward.1} parent=0 // pred_region
    _
  $region25: #{multi_bandit_forward.1} parent=0 // pred_fallthru
    _
  // Predicated region
  $region26: #{multi_bandit_forward.1} parent=0 // pred_check
    _
  $region27: #{multi_bandit_forward.1} parent=0 // pred_check_branch
    %206 = sbr.rel (0) target = $region29
  $region28: #{multi_bandit_forward.1} parent=0 // pred_region
    _
  $region29: #{multi_bandit_forward.1} parent=0 // pred_fallthru
    _

</llo_original>
